<compile_context>
chip_gen: v7x
topology: tpu7x:2x2x1
jax: 0.10.0
libtpu: 0.0.40
codegen_flags: <defaults>
</compile_context>

<pallas_src>
import functools

import jax
import jax.numpy as jnp
from jax import lax
from jax.experimental import pallas as pl
from jax.experimental.pallas import tpu as pltpu

_LANE = 128
_SUBLANE = 8
_MAX_TILE_ROWS = 4096          # 4096 * 128 * 4 B = 2 MiB per f32 input block.
# sigmoid(_PAD_LOGIT) == 0 -> pre_pos == 0 -> padded elements contribute nothing.
# NOTE: -1e9 saturates to -inf for fp16 inputs; sigmoid(-inf) == 0, still correct.
_PAD_LOGIT = -1e9


def _cdiv(a, b):
    return -(-a // b)


def _dcs_kernel(x_ref, t_ref, loss_ref, num_acc, den_acc, *,
                smooth, p, alpha, rows_total, need_row_mask):
    """Grid = (B, num_row_tiles); the row-tile (reduction) axis is innermost."""
    r = pl.program_id(1)
    tile_rows = x_ref.shape[1]          # static

    @pl.when(r == 0)
    def _():
        num_acc[...] = jnp.zeros_like(num_acc)
        den_acc[...] = jnp.zeros_like(den_acc)

    x = x_ref[0].astype(jnp.float32)    # (tile_rows, 128); cast from native dtype
    t = t_ref[0].astype(jnp.float32)

    if need_row_mask:
        # Boundary row-tile: rows past `rows_total` hold unspecified data.
        # Mask before any math so garbage can never reach the accumulators.
        valid = rows_total - r * tile_rows          # >= tile_rows for non-last tiles
        row_id = lax.broadcasted_iota(jnp.int32, (tile_rows, _LANE), 0)
        keep = row_id < valid
        x = jnp.where(keep, x, jnp.float32(_PAD_LOGIT))
        t = jnp.where(keep, t, jnp.float32(0.0))

    # sigmoid(x) = 0.5 * (tanh(x/2) + 1): single EUP transcendental per element.
    predict = 0.5 * (jnp.tanh(0.5 * x) + 1.0)
    # pre_pos = sigmoid(x) * (1 - sigmoid(x)) ** alpha  (non-integer pow -> exp/log)
    pre_pos = predict * jnp.power(1.0 - predict, jnp.float32(alpha))

    num_part = pre_pos * t
    if p == 2:
        # Explicit squaring keeps the p-power on the VPU instead of the EUP.
        den_part = pre_pos * pre_pos + t * t
    elif isinstance(p, int):
        den_part = lax.integer_pow(pre_pos, p) + lax.integer_pow(t, p)
    else:
        den_part = jnp.power(pre_pos, jnp.float32(p)) + jnp.power(t, jnp.float32(p))

    if tile_rows % _SUBLANE == 0:
        # (8, 128) lane/sublane-dense partial sums: reducing the leading
        # (non-layout) axis is plain VPU adds -- no XLU work in the hot loop.
        num_acc[...] += jnp.sum(
            num_part.reshape(tile_rows // _SUBLANE, _SUBLANE, _LANE), axis=0)
        den_acc[...] += jnp.sum(
            den_part.reshape(tile_rows // _SUBLANE, _SUBLANE, _LANE), axis=0)
    else:
        # Only reachable for a single, small (rows < 4096, rows % 8 != 0) tile.
        num_acc[...] += jnp.sum(num_part, axis=0, keepdims=True)
        den_acc[...] += jnp.sum(den_part, axis=0, keepdims=True)

    @pl.when(r == pl.num_programs(1) - 1)
    def _():
        # Single cross-sublane + cross-lane reduce per sample (O(B) XLU total).
        num = jnp.sum(jnp.sum(num_acc[...], axis=0, keepdims=True),
                      axis=1, keepdims=True)
        den = jnp.sum(jnp.sum(den_acc[...], axis=0, keepdims=True),
                      axis=1, keepdims=True)
        den = den + jnp.float32(smooth)
        loss = 1.0 - (2.0 * num + jnp.float32(smooth)) / den   # (1, 1), exact divide
        loss_ref[0] = jnp.broadcast_to(loss, (1, _LANE))


def dcs_loss(inputs, target, *, smooth=0.0001, p=2, alpha=0.01, reduction="mean"):
    assert inputs.shape[0] == target.shape[0], "predict & target batch size don't match"
    B = inputs.shape[0]
    D = 1
    for s in inputs.shape[1:]:
        D *= s

    # Stream inputs in their native dtype (bf16 / int targets stay narrow);
    # the cast to f32 happens inside the kernel.
    x = inputs.reshape(B, D)
    t = target.reshape(B, D)

    rows = _cdiv(D, _LANE)
    lane_pad = rows * _LANE - D
    if lane_pad:
        # Only the non-128-aligned case copies (pads < 128 elems per sample).
        # TODO(synk): a lane-tail mask keyed off the true D would avoid even
        # this copy; kept as a pad since the aligned path is already copy-free.
        x = jnp.pad(x, ((0, 0), (0, lane_pad)), constant_values=_PAD_LOGIT)
        t = jnp.pad(t, ((0, 0), (0, lane_pad)), constant_values=0.0)
    # Metadata-only reshape to the lane/sublane-dense view.
    x = x.reshape(B, rows, _LANE)
    t = t.reshape(B, rows, _LANE)

    if rows <= _MAX_TILE_ROWS:
        tile_rows = rows                 # full-extent block: no (8,128) constraint
    else:
        tile_rows = _MAX_TILE_ROWS       # multiple of 8
    num_row_tiles = _cdiv(rows, tile_rows)
    need_row_mask = (rows % tile_rows) != 0   # partial boundary block -> in-kernel mask

    acc_shape = (_SUBLANE, _LANE) if tile_rows % _SUBLANE == 0 else (1, _LANE)

    kernel = functools.partial(_dcs_kernel, smooth=smooth, p=p, alpha=alpha,
                               rows_total=rows, need_row_mask=need_row_mask)

    n_elems = B * rows * _LANE
    cost = pl.CostEstimate(
        flops=12 * n_elems,
        transcendentals=3 * n_elems,    # tanh (sigmoid) + log + exp (pow)
        bytes_accessed=(x.size * x.dtype.itemsize
                        + t.size * t.dtype.itemsize
                        + B * _LANE * 4),
    )

    out = pl.pallas_call(
        kernel,
        out_shape=jax.ShapeDtypeStruct((B, 1, _LANE), jnp.float32),
        grid_spec=pltpu.PrefetchScalarGridSpec(
            num_scalar_prefetch=0,
            grid=(B, num_row_tiles),
            in_specs=[
                pl.BlockSpec((1, tile_rows, _LANE), lambda b, r: (b, r, 0)),
                pl.BlockSpec((1, tile_rows, _LANE), lambda b, r: (b, r, 0)),
            ],
            out_specs=pl.BlockSpec((1, 1, _LANE), lambda b, r: (b, 0, 0)),
            scratch_shapes=[
                pltpu.VMEM(acc_shape, jnp.float32),
                pltpu.VMEM(acc_shape, jnp.float32),
            ],
        ),
        compiler_params=pltpu.CompilerParams(
            # Batch axis may be split across TensorCores; the reduction axis
            # stays sequential and innermost.
            dimension_semantics=("parallel", "arbitrary"),
            vmem_limit_bytes=32 * 1024 * 1024,
        ),
        cost_estimate=cost,
    )(x, t)

    loss = out[:, 0, 0]
    if reduction == "mean":
        return jnp.mean(loss)
    elif reduction == "sum":
        return jnp.sum(loss)
    elif reduction == "none":
        return loss
    else:
        raise Exception("Unexpected reduction {}".format(reduction))


def _dcs_loss_ref(inputs, target, *, smooth=0.0001, p=2, alpha=0.01, reduction="mean"):
    """Pure-JAX reference mirroring the PyTorch forward."""
    B = inputs.shape[0]
    predict = jax.nn.sigmoid(inputs).reshape(B, -1).astype(jnp.float32)
    t = target.reshape(B, -1).astype(jnp.float32)
    pre_pos = predict * jnp.power(1.0 - predict, alpha)
    num = jnp.sum(pre_pos * t, axis=1)
    den = jnp.sum(jnp.power(pre_pos, p) + jnp.power(t, p), axis=1) + smooth
    loss = 1.0 - (2.0 * num + smooth) / den
    if reduction == "mean":
        return jnp.mean(loss)
    elif reduction == "sum":
        return jnp.sum(loss)
    return loss


if __name__ == "__main__":
    key = jax.random.PRNGKey(0)
    k1, k2 = jax.random.split(key)

    # 1) Canonical small case: D = 4*16*16 = 1024 (128-aligned -> zero-copy path).
    B, C, H, W = 2, 4, 16, 16
    x = jax.random.normal(k1, (B, C, H, W), dtype=jnp.float32)
    target = (jax.random.uniform(k2, (B, C, H, W)) > 0.5).astype(jnp.float32)

    out = jax.block_until_ready(dcs_loss(x, target))
    ref = _dcs_loss_ref(x, target)
    assert jnp.allclose(out, ref, atol=1e-5, rtol=1e-5), (out, ref)

    # 2) Non-128-aligned D (D = 105) exercising the lane-pad / (1,128)-acc path.
    xb = jax.random.normal(k1, (2, 3, 5, 7), dtype=jnp.float32)
    tb = (jax.random.uniform(k2, (2, 3, 5, 7)) > 0.5).astype(jnp.float32)
    out_b = jax.block_until_ready(dcs_loss(xb, tb, reduction="none"))
    ref_b = _dcs_loss_ref(xb, tb, reduction="none")
    assert jnp.allclose(out_b, ref_b, atol=1e-5, rtol=1e-5), (out_b, ref_b)

    # 3) Narrow-dtype streaming: bf16 logits + bf16 targets (kernel upcasts).
    xc = x.astype(jnp.bfloat16)
    tc = target.astype(jnp.bfloat16)
    out_c = jax.block_until_ready(dcs_loss(xc, tc))
    ref_c = _dcs_loss_ref(xc.astype(jnp.float32), tc.astype(jnp.float32))
    assert jnp.allclose(out_c, ref_c, atol=1e-5, rtol=1e-5), (out_c, ref_c)

    # 4) Multi-tile case with a partial boundary row-tile (rows = 4608 > 4096),
    #    exercising the in-kernel row mask (no wrapper-side row padding).
    xd = jax.random.normal(k1, (1, 1, 768, 768), dtype=jnp.float32)
    td = (jax.random.uniform(k2, (1, 1, 768, 768)) > 0.5).astype(jnp.float32)
    out_d = jax.block_until_ready(dcs_loss(xd, td, reduction="none"))
    ref_d = _dcs_loss_ref(xd, td, reduction="none")
    assert jnp.allclose(out_d, ref_d, atol=1e-4, rtol=1e-4), (out_d, ref_d)

    print("KERNEL_OK")
</pallas_src>

<mosaic_0001>
module attributes {stable_mosaic.version = 11 : i64} {
  func.func @_dcs_kernel(%arg0: i32, %arg1: i32, %arg2: memref<1x8x128xf32, #tpu.memory_space<vmem>>, %arg3: memref<1x8x128xf32, #tpu.memory_space<vmem>>, %arg4: memref<1x1x128xf32, #tpu.memory_space<vmem>>, %arg5: memref<8x128xf32, #tpu.memory_space<vmem>>, %arg6: memref<8x128xf32, #tpu.memory_space<vmem>>) attributes {dimension_semantics = [#tpu.dimension_semantics<parallel>, #tpu.dimension_semantics<arbitrary>], iteration_bounds = array<i64: 2, 1>, scalar_prefetch = 0 : i64, scratch_operands = 2 : i64, tpu.core_type = #tpu.core_type<tc>, window_params = [{transform_indices = @transform_0, window_bounds = array<i64: 1, 8, 128>}, {transform_indices = @transform_1, window_bounds = array<i64: 1, 8, 128>}, {transform_indices = @transform_2, window_bounds = array<i64: 1, 1, 128>}]} {
    %c0_i32 = arith.constant 0 : i32
    %0 = arith.cmpi eq, %arg1, %c0_i32 : i32
    %1 = arith.extui %0 : i1 to i32
    %c0_i32_0 = arith.constant 0 : i32
    %2 = arith.cmpi ne, %1, %c0_i32_0 : i32
    scf.if %2 {
      %cst_22 = arith.constant 0.000000e+00 : f32
      %36 = vector.broadcast %cst_22 : f32 to vector<8x128xf32>
      %c0_23 = arith.constant 0 : index
      %c0_24 = arith.constant 0 : index
      %37 = vector.load %arg5[%c0_23, %c0_24] : memref<8x128xf32, #tpu.memory_space<vmem>>, vector<8x128xf32>
      tpu.vector_store %arg5[%c0_23, %c0_24], %36 {strides = array<i32>} : memref<8x128xf32, #tpu.memory_space<vmem>>, vector<8x128xf32>,
      %cst_25 = arith.constant 0.000000e+00 : f32
      %38 = vector.broadcast %cst_25 : f32 to vector<8x128xf32>
      %c0_26 = arith.constant 0 : index
      %c0_27 = arith.constant 0 : index
      %39 = vector.load %arg6[%c0_26, %c0_27] : memref<8x128xf32, #tpu.memory_space<vmem>>, vector<8x128xf32>
      tpu.vector_store %arg6[%c0_26, %c0_27], %38 {strides = array<i32>} : memref<8x128xf32, #tpu.memory_space<vmem>>, vector<8x128xf32>,
    } else {
    }
    %c0 = arith.constant 0 : index
    %c0_1 = arith.constant 0 : index
    %c0_2 = arith.constant 0 : index
    %3 = vector.load %arg2[%c0, %c0_1, %c0_2] : memref<1x8x128xf32, #tpu.memory_space<vmem>>, vector<1x8x128xf32>
    %4 = vector.shape_cast %3 : vector<1x8x128xf32> to vector<8x128xf32>
    %c0_3 = arith.constant 0 : index
    %c0_4 = arith.constant 0 : index
    %c0_5 = arith.constant 0 : index
    %5 = vector.load %arg3[%c0_3, %c0_4, %c0_5] : memref<1x8x128xf32, #tpu.memory_space<vmem>>, vector<1x8x128xf32>
    %6 = vector.shape_cast %5 : vector<1x8x128xf32> to vector<8x128xf32>
    %cst = arith.constant 5.000000e-01 : f32
    %7 = vector.broadcast %cst : f32 to vector<8x128xf32>
    %8 = arith.mulf %7, %4 : vector<8x128xf32>
    %9 = math.tanh %8 : vector<8x128xf32>
    %cst_6 = arith.constant 1.000000e+00 : f32
    %10 = vector.broadcast %cst_6 : f32 to vector<8x128xf32>
    %11 = arith.addf %9, %10 : vector<8x128xf32>
    %cst_7 = arith.constant 5.000000e-01 : f32
    %12 = vector.broadcast %cst_7 : f32 to vector<8x128xf32>
    %13 = arith.mulf %12, %11 : vector<8x128xf32>
    %cst_8 = arith.constant 1.000000e+00 : f32
    %14 = vector.broadcast %cst_8 : f32 to vector<8x128xf32>
    %15 = arith.subf %14, %13 : vector<8x128xf32>
    %cst_9 = arith.constant 0.00999999977 : f32
    %16 = vector.broadcast %cst_9 : f32 to vector<8x128xf32>
    %17 = math.powf %15, %16 : vector<8x128xf32>
    %18 = arith.mulf %13, %17 : vector<8x128xf32>
    %19 = arith.mulf %18, %6 : vector<8x128xf32>
    %20 = arith.mulf %18, %18 : vector<8x128xf32>
    %21 = arith.mulf %6, %6 : vector<8x128xf32>
    %22 = arith.addf %20, %21 : vector<8x128xf32>
    %c0_10 = arith.constant 0 : index
    %c0_11 = arith.constant 0 : index
    %23 = vector.load %arg5[%c0_10, %c0_11] : memref<8x128xf32, #tpu.memory_space<vmem>>, vector<8x128xf32>
    %24 = vector.shape_cast %19 : vector<8x128xf32> to vector<1x8x128xf32>
    %cst_12 = arith.constant dense<0.000000e+00> : vector<8x128xf32>
    %25 = vector.multi_reduction <add>, %24, %cst_12 [0] : vector<1x8x128xf32> to vector<8x128xf32>
    %26 = arith.addf %23, %25 : vector<8x128xf32>
    %c0_13 = arith.constant 0 : index
    %c0_14 = arith.constant 0 : index
    %27 = vector.load %arg5[%c0_13, %c0_14] : memref<8x128xf32, #tpu.memory_space<vmem>>, vector<8x128xf32>
    tpu.vector_store %arg5[%c0_13, %c0_14], %26 {strides = array<i32>} : memref<8x128xf32, #tpu.memory_space<vmem>>, vector<8x128xf32>,
    %c0_15 = arith.constant 0 : index
    %c0_16 = arith.constant 0 : index
    %28 = vector.load %arg6[%c0_15, %c0_16] : memref<8x128xf32, #tpu.memory_space<vmem>>, vector<8x128xf32>
    %29 = vector.shape_cast %22 : vector<8x128xf32> to vector<1x8x128xf32>
    %cst_17 = arith.constant dense<0.000000e+00> : vector<8x128xf32>
    %30 = vector.multi_reduction <add>, %29, %cst_17 [0] : vector<1x8x128xf32> to vector<8x128xf32>
    %31 = arith.addf %28, %30 : vector<8x128xf32>
    %c0_18 = arith.constant 0 : index
    %c0_19 = arith.constant 0 : index
    %32 = vector.load %arg6[%c0_18, %c0_19] : memref<8x128xf32, #tpu.memory_space<vmem>>, vector<8x128xf32>
    tpu.vector_store %arg6[%c0_18, %c0_19], %31 {strides = array<i32>} : memref<8x128xf32, #tpu.memory_space<vmem>>, vector<8x128xf32>,
    %c0_i32_20 = arith.constant 0 : i32
    %33 = arith.cmpi eq, %arg1, %c0_i32_20 : i32
    %34 = arith.extui %33 : i1 to i32
    %c0_i32_21 = arith.constant 0 : i32
    %35 = arith.cmpi ne, %34, %c0_i32_21 : i32
    scf.if %35 {
      %c0_22 = arith.constant 0 : index
      %c0_23 = arith.constant 0 : index
      %36 = vector.load %arg5[%c0_22, %c0_23] : memref<8x128xf32, #tpu.memory_space<vmem>>, vector<8x128xf32>
      %cst_24 = arith.constant dense<0.000000e+00> : vector<128xf32>
      %37 = vector.multi_reduction <add>, %36, %cst_24 [0] : vector<8x128xf32> to vector<128xf32>
      %38 = vector.shape_cast %37 : vector<128xf32> to vector<1x128xf32>
      %cst_25 = arith.constant dense<0.000000e+00> : vector<1xf32>
      %39 = vector.multi_reduction <add>, %38, %cst_25 [1] : vector<1x128xf32> to vector<1xf32>
      %40 = vector.shape_cast %39 : vector<1xf32> to vector<1x1xf32>
      %c0_26 = arith.constant 0 : index
      %c0_27 = arith.constant 0 : index
      %41 = vector.load %arg6[%c0_26, %c0_27] : memref<8x128xf32, #tpu.memory_space<vmem>>, vector<8x128xf32>
      %cst_28 = arith.constant dense<0.000000e+00> : vector<128xf32>
      %42 = vector.multi_reduction <add>, %41, %cst_28 [0] : vector<8x128xf32> to vector<128xf32>
      %43 = vector.shape_cast %42 : vector<128xf32> to vector<1x128xf32>
      %cst_29 = arith.constant dense<0.000000e+00> : vector<1xf32>
      %44 = vector.multi_reduction <add>, %43, %cst_29 [1] : vector<1x128xf32> to vector<1xf32>
      %45 = vector.shape_cast %44 : vector<1xf32> to vector<1x1xf32>
      %cst_30 = arith.constant 9.99999974E-5 : f32
      %46 = vector.broadcast %cst_30 : f32 to vector<1x1xf32>
      %47 = arith.addf %45, %46 : vector<1x1xf32>
      %cst_31 = arith.constant 2.000000e+00 : f32
      %48 = vector.broadcast %cst_31 : f32 to vector<1x1xf32>
      %49 = arith.mulf %48, %40 : vector<1x1xf32>
      %cst_32 = arith.constant 9.99999974E-5 : f32
      %50 = vector.broadcast %cst_32 : f32 to vector<1x1xf32>
      %51 = arith.addf %49, %50 : vector<1x1xf32>
      %52 = arith.divf %51, %47 : vector<1x1xf32>
      %cst_33 = arith.constant 1.000000e+00 : f32
      %53 = vector.broadcast %cst_33 : f32 to vector<1x1xf32>
      %54 = arith.subf %53, %52 : vector<1x1xf32>
      %55 = vector.shape_cast %54 : vector<1x1xf32> to vector<1x1xf32>
      %56 = vector.broadcast %55 : vector<1x1xf32> to vector<1x128xf32>
      %c0_34 = arith.constant 0 : index
      %c0_35 = arith.constant 0 : index
      %c0_36 = arith.constant 0 : index
      %57 = vector.load %arg4[%c0_34, %c0_35, %c0_36] : memref<1x1x128xf32, #tpu.memory_space<vmem>>, vector<1x1x128xf32>
      %58 = vector.shape_cast %57 : vector<1x1x128xf32> to vector<1x128xf32>
      %59 = vector.shape_cast %56 : vector<1x128xf32> to vector<1x1x128xf32>
      tpu.vector_store %arg4[%c0_34, %c0_35, %c0_36], %59 {strides = array<i32>} : memref<1x1x128xf32, #tpu.memory_space<vmem>>, vector<1x1x128xf32>,
    } else {
    }
    return
  }
  func.func @transform_0(%arg0: i32, %arg1: i32) -> (i32, i32, i32) {
    %c0_i32 = arith.constant 0 : i32
    %c0_i32_0 = arith.constant 0 : i32
    return %arg0, %arg1, %c0_i32 : i32, i32, i32
  }
  func.func @transform_1(%arg0: i32, %arg1: i32) -> (i32, i32, i32) {
    %c0_i32 = arith.constant 0 : i32
    %c0_i32_0 = arith.constant 0 : i32
    return %arg0, %arg1, %c0_i32 : i32, i32, i32
  }
  func.func @transform_2(%arg0: i32, %arg1: i32) -> (i32, i32, i32) {
    %c0_i32 = arith.constant 0 : i32
    %c0_i32_0 = arith.constant 0 : i32
    %c0_i32_1 = arith.constant 0 : i32
    return %arg0, %c0_i32, %c0_i32_0 : i32, i32, i32
  }
}

</mosaic_0001>

<llo_original>
// kernel: tpu_custom_call.1
$region0: #{tpu_custom_call.1}
  #allocation0 [shape = 'u32[]', space=smem, size = 0x4, offset = 0x4, fixed_abs, tag = 'smem constant byte address 0x4 - core index']
  #allocation1 [shape = 'u32[144,128]{1,0:T(1,128)}', space=vmem, size = 0x12000, scoped, tag = 'internal scratch']
  #allocation2 [shape = 'f32[8,128]{1,0:T(8,128)}', space=vmem, size = 0x1000, scoped, tag = 'scratch operand']
  #allocation3 [shape = 'f32[8,128]{1,0:T(8,128)}', space=vmem, size = 0x1000, scoped, tag = 'scratch operand']
  %s0 = inlined_call_operand.hbm [shape: f32[2,8,128], index: 0, kind: input, shape index: {}]
  %s1 = inlined_call_operand.hbm [shape: f32[2,8,128], index: 1, kind: input, shape index: {}]
  %s2 = inlined_call_operand.hbm [shape: f32[2,1,128], index: 2, kind: output, shape index: {}]
  %s3 = sld [smem:[#allocation0]]
  $region57: #{tpu_custom_call.1} parent=0
    _
  %s5 = ssub.s32 1, %s3
  %s6 = scalar_select 0, %s5, %s3
  $region1: #{tpu_custom_call.1} parent=0
    #allocation4 [shape = 'u8[8192]{0}', space=vmem, size = 0x2000, scoped, tag = 'input window, operand 0']
    #allocation5 [shape = 's32[2]{0}', space=sflag, size = 0x8, scoped, tag = 'scoped memory for tpu_custom_call.1']
    #allocation6 [shape = 's32[2]{0}', space=sflag, size = 0x8, scoped, tag = 'scoped memory for tpu_custom_call.1']
    #allocation7 [shape = 'u8[8192]{0}', space=vmem, size = 0x2000, scoped, tag = 'input window, operand 1']
    #allocation8 [shape = 's32[2]{0}', space=sflag, size = 0x8, scoped, tag = 'scoped memory for tpu_custom_call.1']
    #allocation9 [shape = 'u8[1024]{0}', space=vmem, size = 0x400, scoped, tag = 'output window, operand 0']
    %7 = vsyncpa [#allocation5], 0
    %s8 = scalar_lea.sflag [#allocation5], 1
    %9 = vsyncpa %s8, 0
    %10 = vsyncpa [#allocation8], 0
    %s11 = scalar_lea.sflag [#allocation8], 1
    %12 = vsyncpa %s11, 0
    %13 = vsyncpa [#allocation6], 0
    %s14 = scalar_lea.sflag [#allocation6], 1
    %15 = vsyncpa %s14, 0
    loop: start=0, step=1, limit=4
    $region2: #{tpu_custom_call.1} parent=1 // loop_pre_header
      _
    $region3: #{tpu_custom_call.1} parent=1 // loop_header
      %s17 = sphi 0, %s21
      %p18 = scmp.ge.s32.totalorder %s17, 4
      %s24 = sphi 0, %s36
      %s25 = sphi 0, %s32
      %s26 = sphi 0, %s24
      %s27 = sphi 0, %s25
      %s28 = sphi 0, %s26
      %s29 = sphi 0, %s27
      %s41 = sphi 0, %s43
      %s44 = sphi 0, %s41
      %s45 = sphi 0, %s44
      %s61 = sphi 0, %s45
      %s69 = sphi 0, %s71
      %s72 = sphi 0, %s69
      %s73 = sphi 0, %s72
      %s89 = sphi 0, %s73
      %s95 = sphi 0, %s97
      %s98 = sphi 0, %s95
      %s99 = sphi 0, %s98
      %s115 = sphi 0, %s99
    $region4: #{tpu_custom_call.1} parent=1 // loop_header_branch
      %20 = sbr.rel (%p18) target = $region8
    $region5: #{tpu_custom_call.1} parent=1 // loop_body
      %s22 = ssub.s32 %s17, 1
      %s23 = ssub.s32 %s17, 2
      %s30 = sadd.s32 1, %s25
      %p31 = scmp.ge.s32.totalorder %s30, 1
      %s32 = scalar_select %p31, 0, %s30
      %s33 = sadd.s32 1, %s24
      %s34 = scalar_select %p31, %s33, %s24
      %p35 = scmp.ge.s32.totalorder %s34, 2
      %s36 = scalar_select %p35, 0, %s34
      %s37 = ssub.s32 %s24, %s36
      %s38 = ssub.s32 %s25, %s32
      %s39 = sor.u32 %s37, %s38
      %p40 = scmp.eq.s32.totalorder %s39, 0
      %s42 = sadd.s32 %s41, 1
      %s43 = scalar_select %p40, %s41, %s42
      %p46 = pneg %p40
      %p47 = scmp.eq.s32.totalorder %s17, 1
      %p48 = por %p46, %p47
      %p49 = scmp.ne.s32.totalorder %s41, %s44
      %p50 = scmp.eq.s32.totalorder %s17, 0
      %p51 = por %p49, %p50
      %p52 = scmp.ne.s32.totalorder %s41, %s44
      %p53 = scmp.eq.s32.totalorder %s22, 1
      %p54 = por %p52, %p53
      %p55 = scmp.ne.s32.totalorder %s44, %s45
      %p56 = scmp.eq.s32.totalorder %s22, 0
      %p57 = por %p55, %p56
      %p58 = scmp.ne.s32.totalorder %s44, %s45
      %p59 = scmp.eq.s32.totalorder %s23, 1
      %p60 = por %p58, %p59
      %p62 = scmp.ne.s32.totalorder %s45, %s61
      %p63 = scmp.eq.s32.totalorder %s23, 0
      %p64 = por %p62, %p63
      %s65 = ssub.s32 %s24, %s36
      %s66 = ssub.s32 %s25, %s32
      %s67 = sor.u32 %s65, %s66
      %p68 = scmp.eq.s32.totalorder %s67, 0
      %s70 = sadd.s32 %s69, 1
      %s71 = scalar_select %p68, %s69, %s70
      %p74 = pneg %p68
      %p75 = scmp.eq.s32.totalorder %s17, 1
      %p76 = por %p74, %p75
      %p77 = scmp.ne.s32.totalorder %s69, %s72
      %p78 = scmp.eq.s32.totalorder %s17, 0
      %p79 = por %p77, %p78
      %p80 = scmp.ne.s32.totalorder %s69, %s72
      %p81 = scmp.eq.s32.totalorder %s22, 1
      %p82 = por %p80, %p81
      %p83 = scmp.ne.s32.totalorder %s72, %s73
      %p84 = scmp.eq.s32.totalorder %s22, 0
      %p85 = por %p83, %p84
      %p86 = scmp.ne.s32.totalorder %s72, %s73
      %p87 = scmp.eq.s32.totalorder %s23, 1
      %p88 = por %p86, %p87
      %p90 = scmp.ne.s32.totalorder %s73, %s89
      %p91 = scmp.eq.s32.totalorder %s23, 0
      %p92 = por %p90, %p91
      %s93 = ssub.s32 %s24, %s36
      %p94 = scmp.eq.s32.totalorder %s93, 0
      %s96 = sadd.s32 %s95, 1
      %s97 = scalar_select %p94, %s95, %s96
      %p100 = pneg %p94
      %p101 = scmp.eq.s32.totalorder %s17, 1
      %p102 = por %p100, %p101
      %p103 = scmp.ne.s32.totalorder %s95, %s98
      %p104 = scmp.eq.s32.totalorder %s17, 0
      %p105 = por %p103, %p104
      %p106 = scmp.ne.s32.totalorder %s95, %s98
      %p107 = scmp.eq.s32.totalorder %s22, 1
      %p108 = por %p106, %p107
      %p109 = scmp.ne.s32.totalorder %s98, %s99
      %p110 = scmp.eq.s32.totalorder %s22, 0
      %p111 = por %p109, %p110
      %p112 = scmp.ne.s32.totalorder %s98, %s99
      %p113 = scmp.eq.s32.totalorder %s23, 1
      %p114 = por %p112, %p113
      %p116 = scmp.ne.s32.totalorder %s99, %s115
      %p117 = scmp.eq.s32.totalorder %s23, 0
      %p118 = por %p116, %p117
      %p119 = scmp.le.s32.totalorder 1, %s17
      %p120 = scmp.lt.s32.totalorder %s17, 3
      %p121 = pnand %p119, %p120
      %p122 = pneg %p121
      // Predicated region
      $region9: #{tpu_custom_call.1} parent=5 // pred_check
        _
      $region10: #{tpu_custom_call.1} parent=5 // pred_check_branch
        %124 = sbr.rel (%p121) target = $region12
      $region11: #{tpu_custom_call.1} parent=5 // pred_region
        %s125 = ssub.s32 %s17, 1
      $region12: #{tpu_custom_call.1} parent=5 // pred_fallthru
        _
      %p126 = scmp.lt.s32.totalorder %s17, 2
      // Predicated region
      $region13: #{tpu_custom_call.1} parent=5 // pred_check
        %p127 = pneg %p126
      $region14: #{tpu_custom_call.1} parent=5 // pred_check_branch
        %129 = sbr.rel (%p127) target = $region16
      $region15: #{tpu_custom_call.1} parent=5 // pred_region
        // Predicated region
        $region17: #{tpu_custom_call.1} parent=15 // pred_check
          %p130 = pneg %p51
        $region18: #{tpu_custom_call.1} parent=15 // pred_check_branch
          %132 = sbr.rel (%p130) target = $region20
        $region19: #{tpu_custom_call.1} parent=15 // pred_region
          %s133 = sand.u32 %s41, 1
          %s134 = scalar_lea.sflag [#allocation5], %s133
          %s135 = sand.u32 %s41, 1
          %s136 = smul.addr %s135, 8
          %s137 = scalar_lea.vmem [#allocation4], %s136
          %s139 = ssub.s32 128, 128
          %140 = vsyncadd %s134, %s139
          %s141 = sadd.s32 %s25, %s24
          %s142 = smul.addr %s141, 128
          %s143 = scalar_lea.hbm %s0, %s142
          %s145 = sshll.u32 %s137, 4
          %s146 = int_to_ptr.vmem [resolvable:$true] %s145
          %148 = dma.hbm_to_vmem [thread:$0]  %s143, 128, %s146, %s134
        $region20: #{tpu_custom_call.1} parent=15 // pred_fallthru
          _
        // Predicated region
        $region21: #{tpu_custom_call.1} parent=15 // pred_check
          %p149 = pneg %p79
        $region22: #{tpu_custom_call.1} parent=15 // pred_check_branch
          %151 = sbr.rel (%p149) target = $region24
        $region23: #{tpu_custom_call.1} parent=15 // pred_region
          %s152 = sand.u32 %s69, 1
          %s153 = scalar_lea.sflag [#allocation8], %s152
          %s154 = sand.u32 %s69, 1
          %s155 = smul.addr %s154, 8
          %s156 = scalar_lea.vmem [#allocation7], %s155
          %s158 = ssub.s32 128, 128
          %159 = vsyncadd %s153, %s158
          %s160 = sadd.s32 %s25, %s24
          %s161 = smul.addr %s160, 128
          %s162 = scalar_lea.hbm %s1, %s161
          %s164 = sshll.u32 %s156, 4
          %s165 = int_to_ptr.vmem [resolvable:$true] %s164
          %167 = dma.hbm_to_vmem [thread:$0]  %s162, 128, %s165, %s153
        $region24: #{tpu_custom_call.1} parent=15 // pred_fallthru
          _
      $region16: #{tpu_custom_call.1} parent=5 // pred_fallthru
        _
      %p168 = scmp.le.s32.totalorder 1, %s17
      %p169 = scmp.lt.s32.totalorder %s17, 3
      %p170 = pnand %p168, %p169
      %p171 = pneg %p170
      // Predicated region
      $region25: #{tpu_custom_call.1} parent=5 // pred_check
        _
      $region26: #{tpu_custom_call.1} parent=5 // pred_check_branch
        %173 = sbr.rel (%p170) target = $region28
      $region27: #{tpu_custom_call.1} parent=5 // pred_region
        %s174 = ssub.s32 %s17, 1
        %s175 = sand.u32 %s44, 1
        %s176 = scalar_lea.sflag [#allocation5], %s175
        %s177 = sand.u32 %s44, 1
        %s178 = smul.addr %s177, 8
        %s179 = scalar_lea.vmem [#allocation4], %s178
        // Predicated region
        $region29: #{tpu_custom_call.1} parent=27 // pred_check
          %p180 = pneg %p57
        $region30: #{tpu_custom_call.1} parent=27 // pred_check_branch
          %182 = sbr.rel (%p180) target = $region32
        $region31: #{tpu_custom_call.1} parent=27 // pred_region
          %183 = dma.done %s176, 128
        $region32: #{tpu_custom_call.1} parent=27 // pred_fallthru
          _
        %s184 = sand.u32 %s72, 1
        %s185 = scalar_lea.sflag [#allocation8], %s184
        %s186 = sand.u32 %s72, 1
        %s187 = smul.addr %s186, 8
        %s188 = scalar_lea.vmem [#allocation7], %s187
        // Predicated region
        $region33: #{tpu_custom_call.1} parent=27 // pred_check
          %p189 = pneg %p85
        $region34: #{tpu_custom_call.1} parent=27 // pred_check_branch
          %191 = sbr.rel (%p189) target = $region36
        $region35: #{tpu_custom_call.1} parent=27 // pred_region
          %192 = dma.done %s185, 128
        $region36: #{tpu_custom_call.1} parent=27 // pred_fallthru
          _
        %s193 = sand.u32 %s44, 1
        %s194 = scalar_lea.sflag [#allocation5], %s193
        %s195 = sand.u32 %s44, 1
        %s196 = smul.addr %s195, 8
        %s197 = scalar_lea.vmem [#allocation4], %s196
        %p198 = pneg %p57
        %p199 = pneg %p54
        %s200 = sand.u32 %s72, 1
        %s201 = scalar_lea.sflag [#allocation8], %s200
        %s202 = sand.u32 %s72, 1
        %s203 = smul.addr %s202, 8
        %s204 = scalar_lea.vmem [#allocation7], %s203
        %p205 = pneg %p85
        %p206 = pneg %p82
        %p207 = pneg %p111
        %p208 = pneg %p108
        %s209 = sand.u32 %s98, 1
        %s210 = scalar_lea.sflag [#allocation6], %s209
        %s211 = sand.u32 %s98, 1
        %s212 = scalar_lea.vmem [#allocation9], %s211
        %p213 = scmp.eq.s32.totalorder %s27, 0
        // Predicated region
        $region37: #{tpu_custom_call.1} parent=27 // pred_check
          %p214 = pneg %p213
        $region38: #{tpu_custom_call.1} parent=27 // pred_check_branch
          %216 = sbr.rel (%p214) target = $region40
        $region39: #{tpu_custom_call.1} parent=27 // pred_region
          %217 = vst [vmem:[#allocation2] sm:$0xff] 0.0
          %218 = vst [vmem:[#allocation3] sm:$0xff] 0.0
        $region40: #{tpu_custom_call.1} parent=27 // pred_fallthru
          _
        %v219 = vld [vmem:[%s179] sm:$0xff]
        %v220 = vld [vmem:[%s188] sm:$0xff]
        %v221 = vmul.f32 %v219, 0.5
        %v222 = vtanh.pop %v221
        %v223 = vadd.f32 %v222, 1.0
        %v224 = vmul.f32 %v223, 0.5
        %v225 = vsub.f32 1.0, %v224
        %v226 = vpow.f32 %v225, 0.01
        %v227 = vmul.f32 %v224, %v226
        %v228 = vmul.f32 %v227, %v220
        %v229 = vmul.f32 %v227, %v227
        %v230 = vmul.f32 %v220, %v220
        %v231 = vadd.f32 %v229, %v230
        %v232 = vld [vmem:[#allocation2] sm:$0xff]
        %v233 = vadd.f32 %v228, 0.0
        %v234 = vadd.f32 %v232, %v233
        %235 = vst [vmem:[#allocation2] sm:$0xff] %v234
        %v236 = vld [vmem:[#allocation3] sm:$0xff]
        %v237 = vadd.f32 %v231, 0.0
        %v238 = vadd.f32 %v236, %v237
        %239 = vst [vmem:[#allocation3] sm:$0xff] %v238
        // Predicated region
        $region41: #{tpu_custom_call.1} parent=27 // pred_check
          %p240 = pneg %p213
        $region42: #{tpu_custom_call.1} parent=27 // pred_check_branch
          %242 = sbr.rel (%p240) target = $region44
        $region43: #{tpu_custom_call.1} parent=27 // pred_region
          %v243 = vld [vmem:[#allocation2] sm:$0xff]
          %v244 = vrot.slane %v243, 4
          %v245 = vadd.f32 %v243, %v244
          %v246 = vrot.slane %v245, 2
          %v247 = vadd.f32 %v245, %v246
          %v248 = vrot.slane %v247, 1
          %v249 = vadd.f32 %v247, %v248
          %250 = vadd.xlane.f32.xlu0 %v249
          %v251 = vpop.xlane.xlu0 %250
          %v252 = vld [vmem:[#allocation3] sm:$0xff]
          %v253 = vrot.slane %v252, 4
          %v254 = vadd.f32 %v252, %v253
          %v255 = vrot.slane %v254, 2
          %v256 = vadd.f32 %v254, %v255
          %v257 = vrot.slane %v256, 1
          %v258 = vadd.f32 %v256, %v257
          %259 = vadd.xlane.f32.xlu0 %v258
          %v260 = vpop.xlane.xlu0 %259
          %v261 = vadd.f32 %v260, 0.0001
          %v262 = vmul.f32 %v251, 2.0
          %v263 = vadd.f32 %v262, 0.0001
          %v264 = vrcp.pop %v261
          %v265 = vmul.f32 %v263, %v264
          %v266 = vsub.f32 1.0, %v265
          %267 = vst [vmem:[%s212] sm:$0x1] %v266
        $region44: #{tpu_custom_call.1} parent=27 // pred_fallthru
          _
        %s268 = sand.u32 %s98, 1
        %s269 = scalar_lea.sflag [#allocation6], %s268
        %s270 = sand.u32 %s98, 1
        %s271 = scalar_lea.vmem [#allocation9], %s270
        // Predicated region
        $region45: #{tpu_custom_call.1} parent=27 // pred_check
          %p272 = pneg %p108
        $region46: #{tpu_custom_call.1} parent=27 // pred_check_branch
          %274 = sbr.rel (%p272) target = $region48
        $region47: #{tpu_custom_call.1} parent=27 // pred_region
          %s276 = ssub.s32 16, 16
          %277 = vsyncadd %s269, %s276
          %s278 = smul.addr %s26, 16
          %s279 = scalar_lea.hbm %s2, %s278
          %s281 = sshll.u32 %s271, 4
          %s282 = int_to_ptr.vmem [resolvable:$true] %s281
          %284 = dma.vmem_to_hbm [thread:$0]  %s282, 16, %s279, %s269
        $region48: #{tpu_custom_call.1} parent=27 // pred_fallthru
          _
      $region28: #{tpu_custom_call.1} parent=5 // pred_fallthru
        _
      %p285 = scmp.le.s32.totalorder 2, %s17
      // Predicated region
      $region49: #{tpu_custom_call.1} parent=5 // pred_check
        %p286 = pneg %p285
      $region50: #{tpu_custom_call.1} parent=5 // pred_check_branch
        %288 = sbr.rel (%p286) target = $region52
      $region51: #{tpu_custom_call.1} parent=5 // pred_region
        %s289 = ssub.s32 %s17, 2
        // Predicated region
        $region53: #{tpu_custom_call.1} parent=51 // pred_check
          %p290 = pneg %p114
        $region54: #{tpu_custom_call.1} parent=51 // pred_check_branch
          %292 = sbr.rel (%p290) target = $region56
        $region55: #{tpu_custom_call.1} parent=51 // pred_region
          %s293 = sand.u32 %s99, 1
          %s294 = scalar_lea.sflag [#allocation6], %s293
          %s295 = sand.u32 %s99, 1
          %s296 = scalar_lea.vmem [#allocation9], %s295
          %297 = dma.done %s294, 16
        $region56: #{tpu_custom_call.1} parent=51 // pred_fallthru
          _
      $region52: #{tpu_custom_call.1} parent=5 // pred_fallthru
        _
    $region6: #{tpu_custom_call.1} parent=1 // loop_footer
      %s21 = sadd.s32 1, %s17
    $region7: #{tpu_custom_call.1} parent=1 // loop_footer_branch
      %16 = sbr.rel target = $region3
    $region8: #{tpu_custom_call.1} parent=1 // loop_exit
      _
    %298 = vsyncpa [#allocation5], 1
    %s299 = scalar_lea.sflag [#allocation5], 1
    %300 = vsyncpa %s299, 1
    %301 = vsyncpa [#allocation8], 1
    %s302 = scalar_lea.sflag [#allocation8], 1
    %303 = vsyncpa %s302, 1
    %304 = vsyncpa [#allocation6], 1
    %s305 = scalar_lea.sflag [#allocation6], 1
    %306 = vsyncpa %s305, 1

</llo_original>
